<compile_context>
chip_gen: v7x
topology: tpu7x:2x2x1
jax: 0.10.0
libtpu: 0.0.40
codegen_flags: <defaults>
</compile_context>

<pallas_src>
import functools

import jax
import jax.numpy as jnp
from jax.experimental import pallas as pl
from jax.experimental.pallas import tpu as pltpu


def _round_up(x, m):
    return (x + m - 1) // m * m


# --------------------------------------------------------------------------
# VMEM planning helpers
# --------------------------------------------------------------------------
def _vmem_plan():
    """Chip-aware (planning_budget_bytes, vmem_limit_bytes)."""
    kind = ""
    try:
        kind = jax.devices()[0].device_kind.lower()
    except Exception:
        pass
    cap = None
    try:
        info_fn = getattr(pltpu, "get_tpu_info", None)
        if info_fn is not None:
            cap = getattr(info_fn(), "vmem_capacity_bytes", None)
    except Exception:
        cap = None
    if "v2" in kind or "v3" in kind:           # 16 MiB VMEM parts
        return 10 * 1024 * 1024, 14 * 1024 * 1024
    big = ("v7" not in kind) and (
        (cap is not None and cap >= 100 * 1024 * 1024)
        or any(v in kind for v in ("v4", "v5", "v6")))
    if big:                                     # 128 MiB VMEM (v4 / v5e / v5p / v6e)
        return 80 * 1024 * 1024, 100 * 1024 * 1024
    # v7x-class (64 MiB per TensorCore) or unknown: stay conservative.
    return 34 * 1024 * 1024, 48 * 1024 * 1024


def _est_bytes_general(bt, tt_out, tt_in, din, h):
    """Per-step VMEM estimate (physical lane/sublane padding + intermediates)."""
    din_v = _round_up(din, 128)
    h_v = _round_up(h, 128)
    per = (2 * bt * _round_up(tt_in, 8) * din_v      # double-buffered input block
           + 2 * bt * _round_up(tt_out, 8) * h_v     # double-buffered output block
           + 2 * _round_up(din, 8) * h_v             # weight (+ copy)
           + bt * _round_up(tt_in, 8) * h_v          # f32 matmul intermediate
           + 2 * bt * _round_up(tt_out, 8) * h_v)    # pooled + staging
    return 4 * per + (1 << 20)                       # + Mosaic internal scratch


def _est_bytes_packed(bt, rows, wx, k):
    per = (2 * bt * _round_up(rows, 8) * wx          # double-buffered input block
           + 2 * bt * _round_up(rows, 8) * 128       # double-buffered output block
           + 2 * k * wx * 128                        # packed weights (+ copy)
           + 3 * _round_up(rows, 8) * 128)           # f32 acc + dot result
    return 4 * per + (1 << 20)


def _pick_bt(b, num_t_tiles, fits):
    """Largest divisor of b (<= 8) that fits VMEM and keeps >= 2 parallel grid
    steps (both v7x TensorCores busy).  Divisor-only keeps the path pad-free.
    TODO(synk): ragged batch blocks (non-divisor bt) without an HBM pad pass.
    """
    if b == 1:
        return 1
    for d in range(min(b, 8), 1, -1):
        if b % d:
            continue
        if (b // d) * num_t_tiles < 2:
            continue
        if fits(d):
            return d
    return 1


# --------------------------------------------------------------------------
# Kernels
# --------------------------------------------------------------------------
def _frame_max_pool_packed_kernel(x_ref, w_ref, b_ref, o_ref):
    # x_ref: (bt, rows, P*stride*Din)   w_ref: (K, P*stride*Din, 128)
    # b_ref: (1, 128)                   o_ref: (bt, rows, 128)
    #
    # Each wide input row holds the P*stride timesteps feeding one lane-packed
    # output row; weight matrix k applies the Conv1d(k=1) linear to window
    # position k of every output and routes it to its output lane segment,
    # so MaxPool1d collapses to a max over K lane-dense matmul results.
    n_win = w_ref.shape[0]
    bt = x_ref.shape[0]
    bias = b_ref[...]
    for bi in range(bt):
        x = x_ref[bi]
        acc = jnp.dot(x, w_ref[0], preferred_element_type=jnp.float32)
        for k in range(1, n_win):
            acc = jnp.maximum(
                acc, jnp.dot(x, w_ref[k], preferred_element_type=jnp.float32))
        # bias after pooling: max(a + b, c + b) == max(a, c) + b.
        o_ref[bi] = (acc + bias).astype(o_ref.dtype)


def _frame_max_pool_kernel(x_ref, w_ref, b_ref, o_ref, *, kernel_size, stride):
    # x_ref: (bt, tt_in, Din)  w_ref: (Din, H)  b_ref: (1, H)  o_ref: (bt, tt_out, H)
    bt = x_ref.shape[0]
    tt_out = o_ref.shape[1]
    span = stride * (tt_out - 1) + 1
    bias = b_ref[...]
    for bi in range(bt):
        # Conv1d(k=1) as one MXU matmul (weight pre-transposed in the wrapper).
        y = jnp.dot(x_ref[bi], w_ref[...], preferred_element_type=jnp.float32)
        # MaxPool1d over time via K strided sublane slices (known-good codegen;
        # avoids a sub-8 second-minor reshape).
        pooled = y[0:span:stride]
        for k in range(1, kernel_size):
            pooled = jnp.maximum(pooled, y[k:k + span:stride])
        o_ref[bi] = (pooled + bias).astype(o_ref.dtype)


# --------------------------------------------------------------------------
# Wrappers
# --------------------------------------------------------------------------
def _frame_max_pool_packed(x, wt, bias, *, kernel_size, stride, pack, t_out,
                           budget, limit):
    B, T, din = x.shape
    h = wt.shape[1]
    rows = t_out // pack                       # lane-packed output rows
    wx = pack * stride * din                   # wide input row width
    x_w = x.reshape(B, T // (pack * stride), wx)   # free, contiguous view

    # Scatter W^T: window position k of output lane-segment j reads the input
    # chunk (j*stride + k) of its wide row.
    wk = jnp.zeros((kernel_size, wx, pack * h), wt.dtype)
    for k in range(kernel_size):
        for j in range(pack):
            c = j * stride + k
            wk = wk.at[k, c * din:(c + 1) * din, j * h:(j + 1) * h].set(wt)
    b_pack = jnp.tile(bias, pack).reshape(1, pack * h)

    bt = _pick_bt(B, 1,
                  lambda d: _est_bytes_packed(d, rows, wx, kernel_size) <= budget)

    out = pl.pallas_call(
        _frame_max_pool_packed_kernel,
        out_shape=jax.ShapeDtypeStruct((B, rows, pack * h), x.dtype),
        grid_spec=pltpu.PrefetchScalarGridSpec(
            num_scalar_prefetch=0,
            grid=(B // bt,),
            in_specs=[
                # Consider pipeline_mode=pl.Buffered(3) here if xprof ever
                # shows exposed input DMA.
                pl.BlockSpec((bt, rows, wx), lambda b: (b, 0, 0)),
                pl.BlockSpec((kernel_size, wx, pack * h), lambda b: (0, 0, 0)),
                pl.BlockSpec((1, pack * h), lambda b: (0, 0)),
            ],
            out_specs=pl.BlockSpec((bt, rows, pack * h), lambda b: (b, 0, 0)),
        ),
        compiler_params=pltpu.CompilerParams(
            dimension_semantics=("parallel",),
            vmem_limit_bytes=limit,
        ),
    )(x_w, wk, b_pack)
    return out.reshape(B, t_out, h)            # free view back to (B, T_out, H)


def frame_max_pool(x, weight, bias, *, kernel_size, stride):
    """x: (B, T, Din), weight: (H, Din), bias: (H,) -> (B, T_out, H)."""
    B, T, din = x.shape
    h = weight.shape[0]
    if T < kernel_size:
        raise ValueError(f"T={T} must be >= kernel_size={kernel_size}")
    t_out = (T - kernel_size) // stride + 1

    budget, limit = _vmem_plan()
    wt = weight.T                               # (Din, H): pre-transposed once

    # ---- lane-packed fast path (fully lane-dense HBM reads/writes) ----
    pack = 128 // h if (128 % h == 0) else 0
    if (pack >= 2 and kernel_size <= stride
            and t_out % pack == 0 and T % (pack * stride) == 0
            and kernel_size * pack <= 8         # keep redundant MXU work under the mem-bound roofline
            and _est_bytes_packed(1, t_out // pack, pack * stride * din,
                                  kernel_size) <= budget):
        return _frame_max_pool_packed(
            x, wt, bias, kernel_size=kernel_size, stride=stride,
            pack=pack, t_out=t_out, budget=budget, limit=limit)

    # ---- general path: unpadded channels, big time tiles ----
    if _est_bytes_general(1, t_out, T, din, h) <= budget:
        # Whole time axis per step (covers kernel_size > stride too).
        tt_out, tt_in, num_t = t_out, T, 1
        x_p, t_out_p = x, t_out
    elif kernel_size <= stride:
        # Time-tiled path for long sequences; the pooling windows are
        # non-overlapping so tiles are clean.
        tt_out = _round_up(t_out, 8)
        while tt_out > 8 and _est_bytes_general(
                1, tt_out, tt_out * stride, din, h) > budget:
            tt_out = max(8, ((tt_out // 2 + 7) // 8) * 8)
        tt_in = tt_out * stride
        t_out_p = _round_up(t_out, tt_out)
        num_t = t_out_p // tt_out
        t_need = t_out_p * stride
        # Pad/slice passes only happen on this ragged, large-T path.
        x_p = jnp.pad(x, ((0, 0), (0, t_need - T), (0, 0))) if t_need > T else x
    else:
        # TODO(synk): halo-aware time tiling for kernel_size > stride when the
        # whole time axis does not fit in VMEM.
        raise NotImplementedError(
            "FrameMaxPool: kernel_size > stride with a time axis too long for "
            "VMEM requires halo tiling, which is not implemented.")

    bt = _pick_bt(B, num_t,
                  lambda d: _est_bytes_general(d, tt_out, tt_in, din, h) <= budget)

    kernel = functools.partial(
        _frame_max_pool_kernel, kernel_size=kernel_size, stride=stride)

    out = pl.pallas_call(
        kernel,
        out_shape=jax.ShapeDtypeStruct((B, t_out_p, h), x.dtype),
        grid_spec=pltpu.PrefetchScalarGridSpec(
            num_scalar_prefetch=0,
            grid=(B // bt, num_t),
            in_specs=[
                pl.BlockSpec((bt, tt_in, din), lambda b, t: (b, t, 0)),
                pl.BlockSpec((din, h), lambda b, t: (0, 0)),
                pl.BlockSpec((1, h), lambda b, t: (0, 0)),
            ],
            out_specs=pl.BlockSpec((bt, tt_out, h), lambda b, t: (b, t, 0)),
        ),
        compiler_params=pltpu.CompilerParams(
            dimension_semantics=("parallel", "parallel"),
            vmem_limit_bytes=limit,
        ),
    )(x_p, wt, bias.reshape(1, h))

    return out if t_out_p == t_out else out[:, :t_out, :]


# --------------------------------------------------------------------------
# Reference + demo
# --------------------------------------------------------------------------
def _reference(x, weight, bias, kernel_size, stride):
    y = jnp.einsum("btd,hd->bth", x, weight) + bias[None, None, :]
    t_out = (x.shape[1] - kernel_size) // stride + 1
    windows = jnp.stack(
        [jax.lax.dynamic_slice_in_dim(y, i * stride, kernel_size, axis=1)
         for i in range(t_out)],
        axis=1)                                 # (B, T_out, K, H)
    return jnp.max(windows, axis=2)


def _run_case(key, *, B, T, input_size, hidden_size, kernel_size, stride):
    kx, kw, kb = jax.random.split(key, 3)
    x = jax.random.normal(kx, (B, T, input_size), dtype=jnp.float32)
    weight = jax.random.normal(
        kw, (hidden_size, input_size), dtype=jnp.float32) * 0.1
    bias = jax.random.normal(kb, (hidden_size,), dtype=jnp.float32) * 0.1

    out = frame_max_pool(x, weight, bias, kernel_size=kernel_size, stride=stride)
    out = jax.block_until_ready(out)

    ref = _reference(x, weight, bias, kernel_size, stride)
    t_out = (T - kernel_size) // stride + 1
    assert out.shape == (B, t_out, hidden_size), (out.shape, (B, t_out, hidden_size))
    assert jnp.allclose(out, ref, atol=1e-4, rtol=1e-4), (
        float(jnp.max(jnp.abs(out - ref))))


if __name__ == "__main__":
    key = jax.random.PRNGKey(0)
    k1, k2 = jax.random.split(key)

    # Config matching the module's typical forward: exercises the lane-packed
    # fast path (Din = H = 32, non-overlapping pooling windows).
    _run_case(k1, B=2, T=16, input_size=32, hidden_size=32,
              kernel_size=2, stride=2)

    # Overlapping pooling windows (kernel_size > stride) and odd batch:
    # exercises the general unpadded path.
    _run_case(k2, B=3, T=24, input_size=32, hidden_size=32,
              kernel_size=3, stride=2)

    print("KERNEL_OK")
</pallas_src>

<mosaic_0001>
module attributes {stable_mosaic.version = 11 : i64} {
  func.func @_frame_max_pool_packed_kernel(%arg0: i32, %arg1: memref<1x2x256xf32, #tpu.memory_space<vmem>>, %arg2: memref<2x256x128xf32, #tpu.memory_space<vmem>>, %arg3: memref<1x128xf32, #tpu.memory_space<vmem>>, %arg4: memref<1x2x128xf32, #tpu.memory_space<vmem>>) attributes {dimension_semantics = [#tpu.dimension_semantics<parallel>], iteration_bounds = array<i64: 2>, scalar_prefetch = 0 : i64, scratch_operands = 0 : i64, tpu.core_type = #tpu.core_type<tc>, window_params = [{transform_indices = @transform_0, window_bounds = array<i64: 1, 2, 256>}, {pipeline_mode = #tpu.pipeline_mode<synchronous>, transform_indices = @transform_1, window_bounds = array<i64: 2, 256, 128>}, {pipeline_mode = #tpu.pipeline_mode<synchronous>, transform_indices = @transform_2, window_bounds = array<i64: 1, 128>}, {transform_indices = @transform_3, window_bounds = array<i64: 1, 2, 128>}]} {
    %c0 = arith.constant 0 : index
    %c0_0 = arith.constant 0 : index
    %0 = vector.load %arg3[%c0, %c0_0] : memref<1x128xf32, #tpu.memory_space<vmem>>, vector<1x128xf32>
    %c0_1 = arith.constant 0 : index
    %c0_2 = arith.constant 0 : index
    %c0_3 = arith.constant 0 : index
    %1 = vector.load %arg1[%c0_1, %c0_2, %c0_3] : memref<1x2x256xf32, #tpu.memory_space<vmem>>, vector<1x2x256xf32>
    %2 = vector.shape_cast %1 : vector<1x2x256xf32> to vector<2x256xf32>
    %c0_4 = arith.constant 0 : index
    %c0_5 = arith.constant 0 : index
    %c0_6 = arith.constant 0 : index
    %3 = vector.load %arg2[%c0_4, %c0_5, %c0_6] : memref<2x256x128xf32, #tpu.memory_space<vmem>>, vector<1x256x128xf32>
    %4 = vector.shape_cast %3 : vector<1x256x128xf32> to vector<256x128xf32>
    %cst = arith.constant dense<0.000000e+00> : vector<2x128xf32>
    %5 = tpu.matmul %2, %4, %cst {dimension_numbers = #tpu.dot_dimension_numbers<[1], [0], [0], [1], [0, 0, 1, 1], [], []>} : vector<2x256xf32>, vector<256x128xf32>, vector<2x128xf32> -> vector<2x128xf32>
    %c1 = arith.constant 1 : index
    %c0_7 = arith.constant 0 : index
    %c0_8 = arith.constant 0 : index
    %6 = vector.load %arg2[%c1, %c0_7, %c0_8] : memref<2x256x128xf32, #tpu.memory_space<vmem>>, vector<1x256x128xf32>
    %7 = vector.shape_cast %6 : vector<1x256x128xf32> to vector<256x128xf32>
    %cst_9 = arith.constant dense<0.000000e+00> : vector<2x128xf32>
    %8 = tpu.matmul %2, %7, %cst_9 {dimension_numbers = #tpu.dot_dimension_numbers<[1], [0], [0], [1], [0, 0, 1, 1], [], []>} : vector<2x256xf32>, vector<256x128xf32>, vector<2x128xf32> -> vector<2x128xf32>
    %9 = arith.maximumf %5, %8 : vector<2x128xf32>
    %10 = vector.broadcast %0 : vector<1x128xf32> to vector<2x128xf32>
    %11 = arith.addf %9, %10 : vector<2x128xf32>
    %c0_10 = arith.constant 0 : index
    %c0_11 = arith.constant 0 : index
    %c0_12 = arith.constant 0 : index
    %12 = vector.load %arg4[%c0_10, %c0_11, %c0_12] : memref<1x2x128xf32, #tpu.memory_space<vmem>>, vector<1x2x128xf32>
    %13 = vector.shape_cast %12 : vector<1x2x128xf32> to vector<2x128xf32>
    %14 = vector.shape_cast %11 : vector<2x128xf32> to vector<1x2x128xf32>
    tpu.vector_store %arg4[%c0_10, %c0_11, %c0_12], %14 {strides = array<i32>} : memref<1x2x128xf32, #tpu.memory_space<vmem>>, vector<1x2x128xf32>,
    return
  }
  func.func @transform_0(%arg0: i32) -> (i32, i32, i32) {
    %c0_i32 = arith.constant 0 : i32
    %c0_i32_0 = arith.constant 0 : i32
    %c0_i32_1 = arith.constant 0 : i32
    return %arg0, %c0_i32, %c0_i32_0 : i32, i32, i32
  }
  func.func @transform_1(%arg0: i32) -> (i32, i32, i32) {
    %c0_i32 = arith.constant 0 : i32
    %c0_i32_0 = arith.constant 0 : i32
    %c0_i32_1 = arith.constant 0 : i32
    %c0_i32_2 = arith.constant 0 : i32
    return %c0_i32, %c0_i32_0, %c0_i32_1 : i32, i32, i32
  }
  func.func @transform_2(%arg0: i32) -> (i32, i32) {
    %c0_i32 = arith.constant 0 : i32
    %c0_i32_0 = arith.constant 0 : i32
    %c0_i32_1 = arith.constant 0 : i32
    return %c0_i32, %c0_i32_0 : i32, i32
  }
  func.func @transform_3(%arg0: i32) -> (i32, i32, i32) {
    %c0_i32 = arith.constant 0 : i32
    %c0_i32_0 = arith.constant 0 : i32
    %c0_i32_1 = arith.constant 0 : i32
    return %arg0, %c0_i32, %c0_i32_0 : i32, i32, i32
  }
}

</mosaic_0001>

<llo_original>
// kernel: tpu_custom_call.1
$region0: #{tpu_custom_call.1}
  #allocation0 [shape = 'u32[]', space=smem, size = 0x4, offset = 0x4, fixed_abs, tag = 'smem constant byte address 0x4 - core index']
  #allocation1 [shape = 'u32[144,128]{1,0:T(1,128)}', space=vmem, size = 0x12000, scoped, tag = 'internal scratch']
  %s0 = inlined_call_operand.hbm [shape: f32[2,2,256], index: 0, kind: input, shape index: {}]
  %s1 = inlined_call_operand.hbm [shape: f32[2,256,128], index: 1, kind: input, shape index: {}]
  %s2 = inlined_call_operand.vmem [shape: f32[1,128], index: 2, kind: input, shape index: {}]
  %s3 = inlined_call_operand.hbm [shape: f32[2,2,128], index: 3, kind: output, shape index: {}]
  %s4 = sld [smem:[#allocation0]]
  $region53: #{tpu_custom_call.1} parent=0
    _
  %s6 = ssub.s32 1, %s4
  %s7 = scalar_select 0, %s6, %s4
  $region1: #{tpu_custom_call.1} parent=0
    #allocation2 [shape = 'u8[4096]{0}', space=vmem, size = 0x1000, scoped, tag = 'input window, operand 0']
    #allocation3 [shape = 's32[2]{0}', space=sflag, size = 0x8, scoped, tag = 'scoped memory for tpu_custom_call.1']
    #allocation4 [shape = 's32[2]{0}', space=sflag, size = 0x8, scoped, tag = 'scoped memory for tpu_custom_call.1']
    #allocation5 [shape = 'u8[262144]{0}', space=vmem, size = 0x40000, scoped, tag = 'input window, operand 1, single buffered']
    #allocation6 [shape = 's32[1]{0}', space=sflag, size = 0x4, scoped, tag = 'scoped memory for tpu_custom_call.1']
    #allocation7 [shape = 'u8[2048]{0}', space=vmem, size = 0x800, scoped, tag = 'output window, operand 0']
    %8 = vsyncpa [#allocation3], 0
    %s9 = scalar_lea.sflag [#allocation3], 1
    %10 = vsyncpa %s9, 0
    %11 = vsyncpa [#allocation6], 0
    %12 = vsyncpa [#allocation4], 0
    %s13 = scalar_lea.sflag [#allocation4], 1
    %14 = vsyncpa %s13, 0
    loop: start=0, step=1, limit=4
    $region2: #{tpu_custom_call.1} parent=1 // loop_pre_header
      _
    $region3: #{tpu_custom_call.1} parent=1 // loop_header
      %s16 = sphi 0, %s20
      %p17 = scmp.ge.s32.totalorder %s16, 4
      %s26 = sphi 0, %s28
      %s29 = sphi 0, %s26
      %s30 = sphi 0, %s29
      %s46 = sphi 0, %s30
      %s50 = sphi 0, %s50
      %s52 = sphi 0, %s50
      %s53 = sphi 0, %s52
      %s67 = sphi 0, %s53
      %s71 = sphi 0, %s71
      %s73 = sphi 0, %s71
      %s74 = sphi 0, %s73
      %s88 = sphi 0, %s74
      %s94 = sphi 0, %s96
      %s97 = sphi 0, %s94
      %s98 = sphi 0, %s97
      %s114 = sphi 0, %s98
    $region4: #{tpu_custom_call.1} parent=1 // loop_header_branch
      %19 = sbr.rel (%p17) target = $region8
    $region5: #{tpu_custom_call.1} parent=1 // loop_body
      %s21 = ssub.s32 %s16, 1
      %s22 = ssub.s32 %s16, 2
      %s23 = sadd.s32 %s16, 1
      %s24 = ssub.s32 %s16, %s23
      %p25 = scmp.eq.s32.totalorder %s24, 0
      %s27 = sadd.s32 %s26, 1
      %s28 = scalar_select %p25, %s26, %s27
      %p31 = pneg %p25
      %p32 = scmp.eq.s32.totalorder %s16, 1
      %p33 = por %p31, %p32
      %p34 = scmp.ne.s32.totalorder %s26, %s29
      %p35 = scmp.eq.s32.totalorder %s16, 0
      %p36 = por %p34, %p35
      %p37 = scmp.ne.s32.totalorder %s26, %s29
      %p38 = scmp.eq.s32.totalorder %s21, 1
      %p39 = por %p37, %p38
      %p40 = scmp.ne.s32.totalorder %s29, %s30
      %p41 = scmp.eq.s32.totalorder %s21, 0
      %p42 = por %p40, %p41
      %p43 = scmp.ne.s32.totalorder %s29, %s30
      %p44 = scmp.eq.s32.totalorder %s22, 1
      %p45 = por %p43, %p44
      %p47 = scmp.ne.s32.totalorder %s30, %s46
      %p48 = scmp.eq.s32.totalorder %s22, 0
      %p49 = por %p47, %p48
      %s51 = sadd.s32 %s50, 1
      %p54 = scmp.eq.s32.totalorder %s16, 1
      %p55 = scmp.ne.s32.totalorder %s50, %s52
      %p56 = scmp.eq.s32.totalorder %s16, 0
      %p57 = por %p55, %p56
      %p58 = scmp.ne.s32.totalorder %s50, %s52
      %p59 = scmp.eq.s32.totalorder %s21, 1
      %p60 = por %p58, %p59
      %p61 = scmp.ne.s32.totalorder %s52, %s53
      %p62 = scmp.eq.s32.totalorder %s21, 0
      %p63 = por %p61, %p62
      %p64 = scmp.ne.s32.totalorder %s52, %s53
      %p65 = scmp.eq.s32.totalorder %s22, 1
      %p66 = por %p64, %p65
      %p68 = scmp.ne.s32.totalorder %s53, %s67
      %p69 = scmp.eq.s32.totalorder %s22, 0
      %p70 = por %p68, %p69
      %s72 = sadd.s32 %s71, 1
      %p75 = scmp.eq.s32.totalorder %s16, 1
      %p76 = scmp.ne.s32.totalorder %s71, %s73
      %p77 = scmp.eq.s32.totalorder %s16, 0
      %p78 = por %p76, %p77
      %p79 = scmp.ne.s32.totalorder %s71, %s73
      %p80 = scmp.eq.s32.totalorder %s21, 1
      %p81 = por %p79, %p80
      %p82 = scmp.ne.s32.totalorder %s73, %s74
      %p83 = scmp.eq.s32.totalorder %s21, 0
      %p84 = por %p82, %p83
      %p85 = scmp.ne.s32.totalorder %s73, %s74
      %p86 = scmp.eq.s32.totalorder %s22, 1
      %p87 = por %p85, %p86
      %p89 = scmp.ne.s32.totalorder %s74, %s88
      %p90 = scmp.eq.s32.totalorder %s22, 0
      %p91 = por %p89, %p90
      %s92 = ssub.s32 %s16, %s23
      %p93 = scmp.eq.s32.totalorder %s92, 0
      %s95 = sadd.s32 %s94, 1
      %s96 = scalar_select %p93, %s94, %s95
      %p99 = pneg %p93
      %p100 = scmp.eq.s32.totalorder %s16, 1
      %p101 = por %p99, %p100
      %p102 = scmp.ne.s32.totalorder %s94, %s97
      %p103 = scmp.eq.s32.totalorder %s16, 0
      %p104 = por %p102, %p103
      %p105 = scmp.ne.s32.totalorder %s94, %s97
      %p106 = scmp.eq.s32.totalorder %s21, 1
      %p107 = por %p105, %p106
      %p108 = scmp.ne.s32.totalorder %s97, %s98
      %p109 = scmp.eq.s32.totalorder %s21, 0
      %p110 = por %p108, %p109
      %p111 = scmp.ne.s32.totalorder %s97, %s98
      %p112 = scmp.eq.s32.totalorder %s22, 1
      %p113 = por %p111, %p112
      %p115 = scmp.ne.s32.totalorder %s98, %s114
      %p116 = scmp.eq.s32.totalorder %s22, 0
      %p117 = por %p115, %p116
      %p118 = scmp.le.s32.totalorder 1, %s16
      %p119 = scmp.lt.s32.totalorder %s16, 3
      %p120 = pnand %p118, %p119
      %p121 = pneg %p120
      // Predicated region
      $region9: #{tpu_custom_call.1} parent=5 // pred_check
        _
      $region10: #{tpu_custom_call.1} parent=5 // pred_check_branch
        %123 = sbr.rel (%p120) target = $region12
      $region11: #{tpu_custom_call.1} parent=5 // pred_region
        %s124 = ssub.s32 %s16, 1
        // Predicated region
        $region13: #{tpu_custom_call.1} parent=11 // pred_check
          %p125 = pneg %p63
        $region14: #{tpu_custom_call.1} parent=11 // pred_check_branch
          %127 = sbr.rel (%p125) target = $region16
        $region15: #{tpu_custom_call.1} parent=11 // pred_region
          %s129 = ssub.s32 8192, 8192
          %130 = vsyncadd [#allocation6], %s129
          %s131 = sshll.u32 [#allocation5], 4
          %s132 = int_to_ptr.vmem [resolvable:$true] %s131
          %137 = dma.hbm_to_vmem [thread:$0]  %s1, 8192, %s132, [#allocation6], 128, 128, 8
        $region16: #{tpu_custom_call.1} parent=11 // pred_fallthru
          _
        // Predicated region
        $region17: #{tpu_custom_call.1} parent=11 // pred_check
          %p138 = pneg %p84
        $region18: #{tpu_custom_call.1} parent=11 // pred_check_branch
          %140 = sbr.rel (%p138) target = $region20
        $region19: #{tpu_custom_call.1} parent=11 // pred_region
          _
        $region20: #{tpu_custom_call.1} parent=11 // pred_fallthru
          _
      $region12: #{tpu_custom_call.1} parent=5 // pred_fallthru
        _
      %p141 = scmp.lt.s32.totalorder %s16, 2
      // Predicated region
      $region21: #{tpu_custom_call.1} parent=5 // pred_check
        %p142 = pneg %p141
      $region22: #{tpu_custom_call.1} parent=5 // pred_check_branch
        %144 = sbr.rel (%p142) target = $region24
      $region23: #{tpu_custom_call.1} parent=5 // pred_region
        // Predicated region
        $region25: #{tpu_custom_call.1} parent=23 // pred_check
          %p145 = pneg %p36
        $region26: #{tpu_custom_call.1} parent=23 // pred_check_branch
          %147 = sbr.rel (%p145) target = $region28
        $region27: #{tpu_custom_call.1} parent=23 // pred_region
          %s148 = sand.u32 %s26, 1
          %s149 = scalar_lea.sflag [#allocation3], %s148
          %s150 = sand.u32 %s26, 1
          %s151 = smul.addr %s150, 4
          %s152 = scalar_lea.vmem [#allocation2], %s151
          %s154 = ssub.s32 64, 64
          %155 = vsyncadd %s149, %s154
          %s156 = smul.addr %s16, 2
          %s157 = smul.addr %s156, 32
          %s158 = scalar_lea.hbm %s0, %s157
          %s160 = sshll.u32 %s152, 4
          %s161 = int_to_ptr.vmem [resolvable:$true] %s160
          %163 = dma.hbm_to_vmem [thread:$0]  %s158, 64, %s161, %s149
        $region28: #{tpu_custom_call.1} parent=23 // pred_fallthru
          _
      $region24: #{tpu_custom_call.1} parent=5 // pred_fallthru
        _
      %p164 = scmp.le.s32.totalorder 1, %s16
      %p165 = scmp.lt.s32.totalorder %s16, 3
      %p166 = pnand %p164, %p165
      %p167 = pneg %p166
      // Predicated region
      $region29: #{tpu_custom_call.1} parent=5 // pred_check
        _
      $region30: #{tpu_custom_call.1} parent=5 // pred_check_branch
        %169 = sbr.rel (%p166) target = $region32
      $region31: #{tpu_custom_call.1} parent=5 // pred_region
        %s170 = ssub.s32 %s16, 1
        %s171 = sand.u32 %s29, 1
        %s172 = scalar_lea.sflag [#allocation3], %s171
        %s173 = sand.u32 %s29, 1
        %s174 = smul.addr %s173, 4
        %s175 = scalar_lea.vmem [#allocation2], %s174
        // Predicated region
        $region33: #{tpu_custom_call.1} parent=31 // pred_check
          %p176 = pneg %p42
        $region34: #{tpu_custom_call.1} parent=31 // pred_check_branch
          %178 = sbr.rel (%p176) target = $region36
        $region35: #{tpu_custom_call.1} parent=31 // pred_region
          %179 = dma.done %s172, 64
        $region36: #{tpu_custom_call.1} parent=31 // pred_fallthru
          _
        // Predicated region
        $region37: #{tpu_custom_call.1} parent=31 // pred_check
          %p180 = pneg %p63
        $region38: #{tpu_custom_call.1} parent=31 // pred_check_branch
          %182 = sbr.rel (%p180) target = $region40
        $region39: #{tpu_custom_call.1} parent=31 // pred_region
          %183 = dma.done [#allocation6], 8192
        $region40: #{tpu_custom_call.1} parent=31 // pred_fallthru
          _
        %s184 = sand.u32 %s29, 1
        %s185 = scalar_lea.sflag [#allocation3], %s184
        %s186 = sand.u32 %s29, 1
        %s187 = smul.addr %s186, 4
        %s188 = scalar_lea.vmem [#allocation2], %s187
        %p189 = pneg %p42
        %p190 = pneg %p39
        %p191 = pneg %p63
        %p192 = pneg %p60
        %p193 = pneg %p84
        %p194 = pneg %p81
        %p195 = pneg %p110
        %p196 = pneg %p107
        %s197 = sand.u32 %s97, 1
        %s198 = scalar_lea.sflag [#allocation4], %s197
        %s199 = sand.u32 %s97, 1
        %s200 = smul.addr %s199, 2
        %s201 = scalar_lea.vmem [#allocation7], %s200
        %v202 = vld [vmem:[%s2] sm:$0x1]
        %v203 = vld [vmem:[%s175] sm:$0xf]
        %v204 = vld [vmem:[#allocation5] sm:$0xff]
        %v205 = vld [vmem:[#allocation5 + $0x8] sm:$0xff]
        %v206 = vld [vmem:[#allocation5 + $0x10] sm:$0xff]
        %v207 = vld [vmem:[#allocation5 + $0x18] sm:$0xff]
        %v208 = vld [vmem:[#allocation5 + $0x20] sm:$0xff]
        %v209 = vld [vmem:[#allocation5 + $0x28] sm:$0xff]
        %v210 = vld [vmem:[#allocation5 + $0x30] sm:$0xff]
        %v211 = vld [vmem:[#allocation5 + $0x38] sm:$0xff]
        %v212 = vld [vmem:[#allocation5 + $0x40] sm:$0xff]
        %v213 = vld [vmem:[#allocation5 + $0x48] sm:$0xff]
        %v214 = vld [vmem:[#allocation5 + $0x50] sm:$0xff]
        %v215 = vld [vmem:[#allocation5 + $0x58] sm:$0xff]
        %v216 = vld [vmem:[#allocation5 + $0x60] sm:$0xff]
        %v217 = vld [vmem:[#allocation5 + $0x68] sm:$0xff]
        %v218 = vld [vmem:[#allocation5 + $0x70] sm:$0xff]
        %v219 = vld [vmem:[#allocation5 + $0x78] sm:$0xff]
        %v220 = vld [vmem:[#allocation5 + $0x80] sm:$0xff]
        %v221 = vld [vmem:[#allocation5 + $0x88] sm:$0xff]
        %v222 = vld [vmem:[#allocation5 + $0x90] sm:$0xff]
        %v223 = vld [vmem:[#allocation5 + $0x98] sm:$0xff]
        %v224 = vld [vmem:[#allocation5 + $0xa0] sm:$0xff]
        %v225 = vld [vmem:[#allocation5 + $0xa8] sm:$0xff]
        %v226 = vld [vmem:[#allocation5 + $0xb0] sm:$0xff]
        %v227 = vld [vmem:[#allocation5 + $0xb8] sm:$0xff]
        %v228 = vld [vmem:[#allocation5 + $0xc0] sm:$0xff]
        %v229 = vld [vmem:[#allocation5 + $0xc8] sm:$0xff]
        %v230 = vld [vmem:[#allocation5 + $0xd0] sm:$0xff]
        %v231 = vld [vmem:[#allocation5 + $0xd8] sm:$0xff]
        %v232 = vld [vmem:[#allocation5 + $0xe0] sm:$0xff]
        %v233 = vld [vmem:[#allocation5 + $0xe8] sm:$0xff]
        %v234 = vld [vmem:[#allocation5 + $0xf0] sm:$0xff]
        %v235 = vld [vmem:[#allocation5 + $0xf8] sm:$0xff]
        %v238 = vunpack.c.l.s4 1983009808
        %v239 = vunpack.c.0.s8 %v238
        %v240 = vlaneseq
        %v241 = vshrl.u32 %v240, 7
        %v242 = vsub.s32 %v239, %v241
        %v243 = vrot.slane %v203, %v242
        %v244 = vcombine.high %v243, %v243
        %247 = vmatprep.subr.mxu0 0.0
        %248 = vmatpush1.msra.mxu0 %v204
        %249 = vmatprep.subr.mxu0 0.0
        %250 = vmatpush1.msra.mxu0 %v205
        %251 = vmatprep.subr.mxu0 0.0
        %252 = vmatpush1.msra.mxu0 %v206
        %253 = vmatprep.subr.mxu0 0.0
        %254 = vmatpush1.msra.mxu0 %v207
        %255 = vmatprep.subr.mxu0 0.0
        %256 = vmatpush1.msra.mxu0 %v208
        %257 = vmatprep.subr.mxu0 0.0
        %258 = vmatpush1.msra.mxu0 %v209
        %259 = vmatprep.subr.mxu0 0.0
        %260 = vmatpush1.msra.mxu0 %v210
        %261 = vmatprep.subr.mxu0 0.0
        %262 = vmatpush1.msra.mxu0 %v211
        %263 = vmatprep.subr.mxu0 0.0
        %264 = vmatpush1.msra.mxu0 %v212
        %265 = vmatprep.subr.mxu0 0.0
        %266 = vmatpush1.msra.mxu0 %v213
        %267 = vmatprep.subr.mxu0 0.0
        %268 = vmatpush1.msra.mxu0 %v214
        %269 = vmatprep.subr.mxu0 0.0
        %270 = vmatpush1.msra.mxu0 %v215
        %271 = vmatprep.subr.mxu0 0.0
        %272 = vmatpush1.msra.mxu0 %v216
        %273 = vmatprep.subr.mxu0 0.0
        %274 = vmatpush1.msra.mxu0 %v217
        %275 = vmatprep.subr.mxu0 0.0
        %276 = vmatpush1.msra.mxu0 %v218
        %277 = vmatprep.subr.mxu0 0.0
        %278 = vmatpush1.msra.mxu0 %v219
        %279 = vmatprep.subr.mxu0 0.0
        %280 = vmatpush1.msra.mxu0 %v220
        %281 = vmatprep.subr.mxu0 0.0
        %282 = vmatpush1.msra.mxu0 %v221
        %283 = vmatprep.subr.mxu0 0.0
        %284 = vmatpush1.msra.mxu0 %v222
        %285 = vmatprep.subr.mxu0 0.0
        %286 = vmatpush1.msra.mxu0 %v223
        %287 = vmatprep.subr.mxu0 0.0
        %288 = vmatpush1.msra.mxu0 %v224
        %289 = vmatprep.subr.mxu0 0.0
        %290 = vmatpush1.msra.mxu0 %v225
        %291 = vmatprep.subr.mxu0 0.0
        %292 = vmatpush1.msra.mxu0 %v226
        %293 = vmatprep.subr.mxu0 0.0
        %294 = vmatpush1.msra.mxu0 %v227
        %295 = vmatprep.subr.mxu0 0.0
        %296 = vmatpush1.msra.mxu0 %v228
        %297 = vmatprep.subr.mxu0 0.0
        %298 = vmatpush1.msra.mxu0 %v229
        %299 = vmatprep.subr.mxu0 0.0
        %300 = vmatpush1.msra.mxu0 %v230
        %301 = vmatprep.subr.mxu0 0.0
        %302 = vmatpush1.msra.mxu0 %v231
        %303 = vmatprep.subr.mxu0 0.0
        %304 = vmatpush1.msra.mxu0 %v232
        %305 = vmatprep.subr.mxu0 0.0
        %306 = vmatpush1.msra.mxu0 %v233
        %307 = vmatprep.subr.mxu0 0.0
        %308 = vmatpush1.msra.mxu0 %v234
        %309 = vmatprep.subr.mxu0 0.0
        %310 = vmatpush1.msra.mxu0 %v235
        %311 = vmatprep.mubr.f32.mxu0 %v244
        %312 = vmatmul.mubr.f32.gmra.mrb[0].mxu0 %v243
        %v313 = vpop.f32.mrb[0].mxu0
        %v314 = vadd.f32 0.0, %v313
        %v315 = vpop.f32.mrb[0].mxu0
        %316 = vdwg.mxu0
        %s317 = scalar_lea.vmem [#allocation5], 256
        %v318 = vld [vmem:[%s317] sm:$0xff]
        %v319 = vld [vmem:[%s317 + $0x8] sm:$0xff]
        %v320 = vld [vmem:[%s317 + $0x10] sm:$0xff]
        %v321 = vld [vmem:[%s317 + $0x18] sm:$0xff]
        %v322 = vld [vmem:[%s317 + $0x20] sm:$0xff]
        %v323 = vld [vmem:[%s317 + $0x28] sm:$0xff]
        %v324 = vld [vmem:[%s317 + $0x30] sm:$0xff]
        %v325 = vld [vmem:[%s317 + $0x38] sm:$0xff]
        %v326 = vld [vmem:[%s317 + $0x40] sm:$0xff]
        %v327 = vld [vmem:[%s317 + $0x48] sm:$0xff]
        %v328 = vld [vmem:[%s317 + $0x50] sm:$0xff]
        %v329 = vld [vmem:[%s317 + $0x58] sm:$0xff]
        %v330 = vld [vmem:[%s317 + $0x60] sm:$0xff]
        %v331 = vld [vmem:[%s317 + $0x68] sm:$0xff]
        %v332 = vld [vmem:[%s317 + $0x70] sm:$0xff]
        %v333 = vld [vmem:[%s317 + $0x78] sm:$0xff]
        %v334 = vld [vmem:[%s317 + $0x80] sm:$0xff]
        %v335 = vld [vmem:[%s317 + $0x88] sm:$0xff]
        %v336 = vld [vmem:[%s317 + $0x90] sm:$0xff]
        %v337 = vld [vmem:[%s317 + $0x98] sm:$0xff]
        %v338 = vld [vmem:[%s317 + $0xa0] sm:$0xff]
        %v339 = vld [vmem:[%s317 + $0xa8] sm:$0xff]
        %v340 = vld [vmem:[%s317 + $0xb0] sm:$0xff]
        %v341 = vld [vmem:[%s317 + $0xb8] sm:$0xff]
        %v342 = vld [vmem:[%s317 + $0xc0] sm:$0xff]
        %v343 = vld [vmem:[%s317 + $0xc8] sm:$0xff]
        %v344 = vld [vmem:[%s317 + $0xd0] sm:$0xff]
        %v345 = vld [vmem:[%s317 + $0xd8] sm:$0xff]
        %v346 = vld [vmem:[%s317 + $0xe0] sm:$0xff]
        %v347 = vld [vmem:[%s317 + $0xe8] sm:$0xff]
        %v348 = vld [vmem:[%s317 + $0xf0] sm:$0xff]
        %v349 = vld [vmem:[%s317 + $0xf8] sm:$0xff]
        %350 = vmatprep.subr.mxu0 0.0
        %351 = vmatpush1.msra.mxu0 %v318
        %352 = vmatprep.subr.mxu0 0.0
        %353 = vmatpush1.msra.mxu0 %v319
        %354 = vmatprep.subr.mxu0 0.0
        %355 = vmatpush1.msra.mxu0 %v320
        %356 = vmatprep.subr.mxu0 0.0
        %357 = vmatpush1.msra.mxu0 %v321
        %358 = vmatprep.subr.mxu0 0.0
        %359 = vmatpush1.msra.mxu0 %v322
        %360 = vmatprep.subr.mxu0 0.0
        %361 = vmatpush1.msra.mxu0 %v323
        %362 = vmatprep.subr.mxu0 0.0
        %363 = vmatpush1.msra.mxu0 %v324
        %364 = vmatprep.subr.mxu0 0.0
        %365 = vmatpush1.msra.mxu0 %v325
        %366 = vmatprep.subr.mxu0 0.0
        %367 = vmatpush1.msra.mxu0 %v326
        %368 = vmatprep.subr.mxu0 0.0
        %369 = vmatpush1.msra.mxu0 %v327
        %370 = vmatprep.subr.mxu0 0.0
        %371 = vmatpush1.msra.mxu0 %v328
        %372 = vmatprep.subr.mxu0 0.0
        %373 = vmatpush1.msra.mxu0 %v329
        %374 = vmatprep.subr.mxu0 0.0
        %375 = vmatpush1.msra.mxu0 %v330
        %376 = vmatprep.subr.mxu0 0.0
        %377 = vmatpush1.msra.mxu0 %v331
        %378 = vmatprep.subr.mxu0 0.0
        %379 = vmatpush1.msra.mxu0 %v332
        %380 = vmatprep.subr.mxu0 0.0
        %381 = vmatpush1.msra.mxu0 %v333
        %382 = vmatprep.subr.mxu0 0.0
        %383 = vmatpush1.msra.mxu0 %v334
        %384 = vmatprep.subr.mxu0 0.0
        %385 = vmatpush1.msra.mxu0 %v335
        %386 = vmatprep.subr.mxu0 0.0
        %387 = vmatpush1.msra.mxu0 %v336
        %388 = vmatprep.subr.mxu0 0.0
        %389 = vmatpush1.msra.mxu0 %v337
        %390 = vmatprep.subr.mxu0 0.0
        %391 = vmatpush1.msra.mxu0 %v338
        %392 = vmatprep.subr.mxu0 0.0
        %393 = vmatpush1.msra.mxu0 %v339
        %394 = vmatprep.subr.mxu0 0.0
        %395 = vmatpush1.msra.mxu0 %v340
        %396 = vmatprep.subr.mxu0 0.0
        %397 = vmatpush1.msra.mxu0 %v341
        %398 = vmatprep.subr.mxu0 0.0
        %399 = vmatpush1.msra.mxu0 %v342
        %400 = vmatprep.subr.mxu0 0.0
        %401 = vmatpush1.msra.mxu0 %v343
        %402 = vmatprep.subr.mxu0 0.0
        %403 = vmatpush1.msra.mxu0 %v344
        %404 = vmatprep.subr.mxu0 0.0
        %405 = vmatpush1.msra.mxu0 %v345
        %406 = vmatprep.subr.mxu0 0.0
        %407 = vmatpush1.msra.mxu0 %v346
        %408 = vmatprep.subr.mxu0 0.0
        %409 = vmatpush1.msra.mxu0 %v347
        %410 = vmatprep.subr.mxu0 0.0
        %411 = vmatpush1.msra.mxu0 %v348
        %412 = vmatprep.subr.mxu0 0.0
        %413 = vmatpush1.msra.mxu0 %v349
        %414 = vmatprep.mubr.f32.mxu0 %v244
        %415 = vmatmul.mubr.f32.gmra.mrb[0].mxu0 %v243
        %v416 = vpop.f32.mrb[0].mxu0
        %v417 = vadd.f32 0.0, %v416
        %v418 = vpop.f32.mrb[0].mxu0
        %419 = vdwg.mxu0
        %v420 = vmax.f32 %v314, %v417
        %v422 = vlaneseq
        %v423 = vshrl.u32 %v422, 7
        %v424 = vsub.s32 0, %v423
        %v425 = vrot.slane %v202, %v424
        %v427 = vadd.f32 %v420, %v425
        %428 = vst [vmem:[%s201] sm:$0x3] %v427
        %s429 = sand.u32 %s97, 1
        %s430 = scalar_lea.sflag [#allocation4], %s429
        %s431 = sand.u32 %s97, 1
        %s432 = smul.addr %s431, 2
        %s433 = scalar_lea.vmem [#allocation7], %s432
        // Predicated region
        $region41: #{tpu_custom_call.1} parent=31 // pred_check
          %p434 = pneg %p107
        $region42: #{tpu_custom_call.1} parent=31 // pred_check_branch
          %436 = sbr.rel (%p434) target = $region44
        $region43: #{tpu_custom_call.1} parent=31 // pred_region
          %s438 = ssub.s32 32, 32
          %439 = vsyncadd %s430, %s438
          %s440 = smul.addr %s21, 32
          %s441 = scalar_lea.hbm %s3, %s440
          %s443 = sshll.u32 %s433, 4
          %s444 = int_to_ptr.vmem [resolvable:$true] %s443
          %446 = dma.vmem_to_hbm [thread:$0]  %s444, 32, %s441, %s430
        $region44: #{tpu_custom_call.1} parent=31 // pred_fallthru
          _
      $region32: #{tpu_custom_call.1} parent=5 // pred_fallthru
        _
      %p447 = scmp.le.s32.totalorder 2, %s16
      // Predicated region
      $region45: #{tpu_custom_call.1} parent=5 // pred_check
        %p448 = pneg %p447
      $region46: #{tpu_custom_call.1} parent=5 // pred_check_branch
        %450 = sbr.rel (%p448) target = $region48
      $region47: #{tpu_custom_call.1} parent=5 // pred_region
        %s451 = ssub.s32 %s16, 2
        // Predicated region
        $region49: #{tpu_custom_call.1} parent=47 // pred_check
          %p452 = pneg %p113
        $region50: #{tpu_custom_call.1} parent=47 // pred_check_branch
          %454 = sbr.rel (%p452) target = $region52
        $region51: #{tpu_custom_call.1} parent=47 // pred_region
          %s455 = sand.u32 %s98, 1
          %s456 = scalar_lea.sflag [#allocation4], %s455
          %s457 = sand.u32 %s98, 1
          %s458 = smul.addr %s457, 2
          %s459 = scalar_lea.vmem [#allocation7], %s458
          %460 = dma.done %s456, 32
        $region52: #{tpu_custom_call.1} parent=47 // pred_fallthru
          _
      $region48: #{tpu_custom_call.1} parent=5 // pred_fallthru
        _
    $region6: #{tpu_custom_call.1} parent=1 // loop_footer
      %s20 = sadd.s32 1, %s16
    $region7: #{tpu_custom_call.1} parent=1 // loop_footer_branch
      %15 = sbr.rel target = $region3
    $region8: #{tpu_custom_call.1} parent=1 // loop_exit
      _
    %461 = vsyncpa [#allocation3], 1
    %s462 = scalar_lea.sflag [#allocation3], 1
    %463 = vsyncpa %s462, 1
    %464 = vsyncpa [#allocation6], 1
    %465 = vsyncpa [#allocation4], 1
    %s466 = scalar_lea.sflag [#allocation4], 1
    %467 = vsyncpa %s466, 1

</llo_original>
